<compile_context>
chip_gen: v6e
topology: v6e:2x2x1
jax: 0.10.0
libtpu: 0.0.40
codegen_flags: <defaults>
</compile_context>

<pallas_src>
import functools

import jax
import jax.numpy as jnp
from jax import lax
from jax.experimental import pallas as pl
from jax.experimental.pallas import tpu as pltpu


def _fusion_kernel(scale, eps, ch, tq, n_q_tiles, mm_dtype,
                   k_ref,     # (C,    N)   prompt_l channel-major (keys)
                   q_ref,     # (C,    Tq)  prompt_h query tile channel-major
                   xv_ref,    # (Ch+1, N)   [x_V ; ones] channel-major (values + denom row)
                   wp_ref,    # (Ch,   Ch)  linear_p weight (PyTorch (out, in) layout)
                   vec_ref,   # (Ch,   3)   columns: [bp | gamma | beta]
                   out_ref):  # (Ch,   Tq)  channel-major output tile
    f32 = jnp.float32
    bp = vec_ref[:, 0:1]           # (Ch, 1): broadcasts over the lane (token) axis
    gamma = vec_ref[:, 1:2]
    beta = vec_ref[:, 2:3]

    # Fold the softmax scale into Q and transpose only this SMALL (C, Tq) block
    # (f32 transpose, then cast) so the two big matmuls below are canonical /
    # trans_b forms and the big (C, N) key block is never relaid out.
    q_t = jnp.transpose(q_ref[...].astype(f32) * scale).astype(mm_dtype)   # (Tq, C)

    # Scores, token-major: s[q, k] = scale * sum_c Q[c, q] * K[c, k]
    s = jnp.dot(q_t, k_ref[...].astype(mm_dtype),
                preferred_element_type=f32)                                 # (Tq, N)

    # Softmax over keys (lane axis). One fused subtract+exp+cast pass over the
    # (Tq, N) block; the denominator falls out of the P@V matmul (ones row of
    # xv_ref), so there is no extra pass and no transpose for it.
    e = jnp.exp(s - jnp.max(s, axis=-1, keepdims=True)).astype(mm_dtype)    # (Tq, N)

    xv = xv_ref[...]                                                        # (Ch+1, N) f32
    # pv_aug[i, q] = sum_k xv[i, k] * e[q, k]: rows 0..Ch-1 = unnormalized P@V,
    # row Ch = softmax denominator, already in (1, Tq) orientation.
    pv_aug = lax.dot_general(xv.astype(mm_dtype), e,
                             dimension_numbers=(((1,), (1,)), ((), ())),
                             preferred_element_type=f32)                    # (Ch+1, Tq)
    inv_denom = pl.reciprocal(pv_aug[ch:ch + 1, :], approx=False)           # (1, Tq)
    pv = pv_aug[:ch, :] * inv_denom                                         # (Ch, Tq)

    # Residual x_V for this query tile: lane-aligned slice of the resident x_V
    # block (no second projection, no extra DMA per review item 2).
    if n_q_tiles == 1:
        x_v_q = xv[:ch, :]
    else:
        q_start = pl.multiple_of(pl.program_id(1) * tq, 128)
        x_v_q = xv_ref[:, pl.ds(q_start, tq)][:ch, :]                       # (Ch, Tq) f32

    # prompt = linear_p(prompt) + x_V   (channel-major: Wp @ pv + bp + x_V)
    prompt = jnp.dot(wp_ref[...].astype(mm_dtype), pv.astype(mm_dtype),
                     preferred_element_type=f32) + bp + x_v_q               # (Ch, Tq)

    # LayerNorm over channels (axis 0 in channel-major), biased variance, affine.
    mean = jnp.mean(prompt, axis=0, keepdims=True)
    cent = prompt - mean
    var = jnp.mean(cent * cent, axis=0, keepdims=True)
    out_ref[...] = (cent * lax.rsqrt(var + eps) * gamma + beta).astype(out_ref.dtype)


def _plan_tiles(N, C, Ch, B, in_dtype, mm_dtype, out_dtype):
    """Pick the query-tile size Tq and the scoped-VMEM limit based on the actual
    chip's VMEM capacity (64 MiB per TensorCore on v7x vs 128 MiB on v5e/v6e)."""
    in_sz = jnp.dtype(in_dtype).itemsize
    mm_sz = jnp.dtype(mm_dtype).itemsize
    out_sz = jnp.dtype(out_dtype).itemsize
    try:
        cap = int(pltpu.get_tpu_info().vmem_capacity_bytes)
    except Exception:
        cap = 64 * 1024 * 1024          # conservative fallback: v7x per-core VMEM
    budget = cap * 5 // 8               # ~40 MiB on v7x, ~80 MiB on v5e/v6e
    vmem_limit = cap * 3 // 4

    def residency(t):
        r = 2 * C * N * in_sz           # keys (double-buffered; change only per batch)
        r += 2 * (Ch + 1) * N * 4       # x_V + ones row (double-buffered, f32)
        r += 2 * C * t * in_sz          # query tile (double-buffered)
        r += 2 * Ch * t * out_sz        # output tile (double-buffered)
        r += t * N * (4 + mm_sz)        # f32 scores/exp + mm-dtype copy fed to the MXU
        return r + (1 << 20)            # misc slack
    # TODO(synk): pipeline_mode=pl.Buffered(1) on the key / x_V blocks (they only
    # change once per batch) would buy back C*N*in_sz + (Ch+1)*N*4 bytes on v7x.

    if N % 128 != 0:
        return N, vmem_limit            # single full-extent tile (block == array dim)

    cands = sorted({t for t in (128, 256, 512, 1024, 2048, N)
                    if t <= N and N % t == 0}, reverse=True)
    # v7x has 2 TensorCores: with a small batch keep >= 2 (ideally 4) parallel
    # grid steps so both cores get work; v5e/v6e are single-core (no-op there).
    min_steps = 1 if B >= 4 else (2 if B >= 2 else 4)
    for need in (min_steps, 2, 1):
        for t in cands:
            if residency(t) <= budget and B * (N // t) >= need:
                return t, vmem_limit
    # TODO(synk): for N so large that even Tq=128 plus the full (C, N) keys exceed
    # the budget, the key axis needs an online-softmax streaming loop (extra
    # 'arbitrary' grid axis); not implemented here.
    return cands[-1], vmem_limit


def dual_dynamic_fusion(prompt_l, prompt_h, x_ori, params, *,
                        matmul_dtype=jnp.bfloat16):
    """Forward pass of DualDynamicFusion. Output shape (B, C//2, H, W)."""
    B, C, H, W = x_ori.shape
    N = H * W
    Ch = C // 2
    scale = float(Ch) ** (-0.5)
    eps = 1e-5
    f32 = jnp.float32

    # NCHW -> channel-major (B, C, N): pure reshapes, no HBM transpose passes.
    x_k = prompt_l.reshape(B, C, N)
    x_q = prompt_h.reshape(B, C, N)
    x_o = x_ori.reshape(B, C, N)

    # x_V = linear_o(x_ori) is query-tile independent: compute it once here as a
    # single batched XLA matmul (instead of once per grid step in the kernel) and
    # append a row of ones so the in-kernel P@V matmul also yields the softmax
    # denominator. Keeps both grid axes 'parallel' (v7x megacore).
    wo = params["wo"].astype(f32)
    bo = params["bo"].astype(f32)
    x_v = jnp.einsum("oc,bcn->bon", wo, x_o.astype(f32),
                     precision=lax.Precision.HIGHEST) + bo[None, :, None]
    x_v_aug = jnp.concatenate([x_v, jnp.ones((B, 1, N), f32)], axis=1)   # (B, Ch+1, N)

    wp = params["wp"].astype(f32)
    vec = jnp.stack([params["bp"].astype(f32), params["gamma"].astype(f32),
                     params["beta"].astype(f32)], axis=1)                # (Ch, 3)

    tq, vmem_limit = _plan_tiles(N, C, Ch, B, x_k.dtype, matmul_dtype, x_ori.dtype)
    nq = N // tq

    kernel = functools.partial(_fusion_kernel, scale, eps, Ch, tq, nq, matmul_dtype)

    keys_spec = pl.BlockSpec((None, C, N), lambda b, qi: (b, 0, 0))
    qtile_spec = pl.BlockSpec((None, C, tq), lambda b, qi: (b, 0, qi))
    vals_spec = pl.BlockSpec((None, Ch + 1, N), lambda b, qi: (b, 0, 0))
    wmat_spec = pl.BlockSpec((Ch, Ch), lambda b, qi: (0, 0))
    vect_spec = pl.BlockSpec((Ch, 3), lambda b, qi: (0, 0))

    out_cm = pl.pallas_call(
        kernel,
        out_shape=jax.ShapeDtypeStruct((B, Ch, N), x_ori.dtype),
        grid_spec=pl.GridSpec(
            grid=(B, nq),
            in_specs=[keys_spec, qtile_spec, vals_spec, wmat_spec, vect_spec],
            out_specs=pl.BlockSpec((None, Ch, tq), lambda b, qi: (b, 0, qi)),
        ),
        compiler_params=pltpu.CompilerParams(
            dimension_semantics=("parallel", "parallel"),
            vmem_limit_bytes=vmem_limit),
    )(x_k, x_q, x_v_aug, wp, vec)

    # (B, Ch, N) -> (B, Ch, H, W): pure reshape (stores were already lane-dense).
    return out_cm.reshape(B, Ch, H, W)


def _reference(prompt_l, prompt_h, x_ori, params, matmul_dtype=jnp.float32):
    """Pure-JAX token-major reference matching the PyTorch module. When
    matmul_dtype is bf16, the kernel's MXU-operand rounding is emulated so the
    comparison isolates kernel plumbing from expected low-precision drift."""
    B, C, H, W = x_ori.shape
    N = H * W
    Ch = C // 2
    scale = float(Ch) ** (-0.5)
    f32 = jnp.float32
    hi = lax.Precision.HIGHEST
    rnd = lambda t: t.astype(matmul_dtype).astype(f32)
    tok = lambda t: jnp.transpose(t.reshape(B, C, N).astype(f32), (0, 2, 1))

    x_v = jnp.einsum("bnc,oc->bno", tok(x_ori), params["wo"].astype(f32),
                     precision=hi) + params["bo"]
    x_k, x_q = tok(prompt_l), tok(prompt_h)
    s = jnp.einsum("bqc,bkc->bqk", rnd(x_q * scale), rnd(x_k), precision=hi)
    e = rnd(jnp.exp(s - jnp.max(s, axis=-1, keepdims=True)))
    denom = jnp.sum(e, axis=-1, keepdims=True)
    p = jnp.einsum("bqk,bko->bqo", e, rnd(x_v), precision=hi) / denom
    p = jnp.einsum("bqi,oi->bqo", rnd(p), rnd(params["wp"].astype(f32)),
                   precision=hi) + params["bp"] + x_v
    mean = jnp.mean(p, axis=-1, keepdims=True)
    var = jnp.mean((p - mean) ** 2, axis=-1, keepdims=True)
    pn = (p - mean) / jnp.sqrt(var + 1e-5) * params["gamma"] + params["beta"]
    return jnp.transpose(pn, (0, 2, 1)).reshape(B, Ch, H, W)


def _init_params(key, C):
    Ch = C // 2
    k1, k2, k3, k4 = jax.random.split(key, 4)
    lim_o = 1.0 / (C ** 0.5)
    lim_p = 1.0 / (Ch ** 0.5)
    return {
        "wo": jax.random.uniform(k1, (Ch, C), jnp.float32, -lim_o, lim_o),
        "bo": jax.random.uniform(k2, (Ch,), jnp.float32, -lim_o, lim_o),
        "wp": jax.random.uniform(k3, (Ch, Ch), jnp.float32, -lim_p, lim_p),
        "bp": jax.random.uniform(k4, (Ch,), jnp.float32, -lim_p, lim_p),
        "gamma": jnp.ones((Ch,), jnp.float32),
        "beta": jnp.zeros((Ch,), jnp.float32),
    }


if __name__ == "__main__":
    B, C, H, W = 2, 8, 16, 16
    key = jax.random.PRNGKey(0)
    kp, k1, k2, k3 = jax.random.split(key, 4)
    params = _init_params(kp, C)
    prompt_l = jax.random.normal(k1, (B, C, H, W), jnp.float32)
    prompt_h = jax.random.normal(k2, (B, C, H, W), jnp.float32)
    x_ori = jax.random.normal(k3, (B, C, H, W), jnp.float32)

    # Accuracy path: f32 MXU operands.
    out_f32 = jax.block_until_ready(
        dual_dynamic_fusion(prompt_l, prompt_h, x_ori, params,
                            matmul_dtype=jnp.float32))
    ref_f32 = _reference(prompt_l, prompt_h, x_ori, params, jnp.float32)
    assert out_f32.shape == (B, C // 2, H, W)
    err32 = float(jnp.max(jnp.abs(out_f32 - ref_f32)))
    assert jnp.allclose(out_f32, ref_f32, atol=5e-3, rtol=5e-3), err32

    # Fast path (default): bf16 MXU operands with f32 accumulation; compared
    # against a reference that emulates the same operand rounding.
    out_bf16 = jax.block_until_ready(
        dual_dynamic_fusion(prompt_l, prompt_h, x_ori, params))
    ref_bf16 = _reference(prompt_l, prompt_h, x_ori, params, jnp.bfloat16)
    errbf = float(jnp.max(jnp.abs(out_bf16 - ref_bf16)))
    assert out_bf16.shape == (B, C // 2, H, W)
    assert jnp.allclose(out_bf16, ref_bf16, atol=3e-2, rtol=3e-2), errbf

    print("KERNEL_OK")
</pallas_src>

<mosaic_0001>
module attributes {stable_mosaic.version = 11 : i64} {
  func.func @_fusion_kernel(%arg0: i32, %arg1: i32, %arg2: memref<1x8x256xf32, #tpu.memory_space<vmem>>, %arg3: memref<1x8x256xf32, #tpu.memory_space<vmem>>, %arg4: memref<1x5x256xf32, #tpu.memory_space<vmem>>, %arg5: memref<4x4xf32, #tpu.memory_space<vmem>>, %arg6: memref<4x3xf32, #tpu.memory_space<vmem>>, %arg7: memref<1x4x256xf32, #tpu.memory_space<vmem>>) attributes {dimension_semantics = [#tpu.dimension_semantics<parallel>, #tpu.dimension_semantics<parallel>], iteration_bounds = array<i64: 2, 1>, scalar_prefetch = 0 : i64, scratch_operands = 0 : i64, tpu.core_type = #tpu.core_type<tc>, window_params = [{transform_indices = @transform_0, window_bounds = array<i64: 1, 8, 256>}, {transform_indices = @transform_1, window_bounds = array<i64: 1, 8, 256>}, {transform_indices = @transform_2, window_bounds = array<i64: 1, 5, 256>}, {pipeline_mode = #tpu.pipeline_mode<synchronous>, transform_indices = @transform_3, window_bounds = array<i64: 4, 4>}, {pipeline_mode = #tpu.pipeline_mode<synchronous>, transform_indices = @transform_4, window_bounds = array<i64: 4, 3>}, {transform_indices = @transform_5, window_bounds = array<i64: 1, 4, 256>}]} {
    %c0 = arith.constant 0 : index
    %c0_0 = arith.constant 0 : index
    %0 = vector.load %arg6[%c0, %c0_0] : memref<4x3xf32, #tpu.memory_space<vmem>>, vector<4x1xf32>
    %c0_1 = arith.constant 0 : index
    %c1 = arith.constant 1 : index
    %1 = vector.load %arg6[%c0_1, %c1] : memref<4x3xf32, #tpu.memory_space<vmem>>, vector<4x1xf32>
    %c0_2 = arith.constant 0 : index
    %c2 = arith.constant 2 : index
    %2 = vector.load %arg6[%c0_2, %c2] : memref<4x3xf32, #tpu.memory_space<vmem>>, vector<4x1xf32>
    %c0_3 = arith.constant 0 : index
    %c0_4 = arith.constant 0 : index
    %c0_5 = arith.constant 0 : index
    %3 = vector.load %arg3[%c0_3, %c0_4, %c0_5] : memref<1x8x256xf32, #tpu.memory_space<vmem>>, vector<1x8x256xf32>
    %4 = vector.shape_cast %3 : vector<1x8x256xf32> to vector<8x256xf32>
    %cst = arith.constant 5.000000e-01 : f32
    %5 = vector.broadcast %cst : f32 to vector<8x256xf32>
    %6 = arith.mulf %4, %5 : vector<8x256xf32>
    %7 = tpu.transpose %6, [1, 0] : vector<8x256xf32> -> vector<256x8xf32>
    %c0_6 = arith.constant 0 : index
    %c0_7 = arith.constant 0 : index
    %c0_8 = arith.constant 0 : index
    %8 = vector.load %arg2[%c0_6, %c0_7, %c0_8] : memref<1x8x256xf32, #tpu.memory_space<vmem>>, vector<1x8x256xf32>
    %9 = vector.shape_cast %8 : vector<1x8x256xf32> to vector<8x256xf32>
    %cst_9 = arith.constant dense<0.000000e+00> : vector<256x256xf32>
    %10 = tpu.matmul %7, %9, %cst_9 {dimension_numbers = #tpu.dot_dimension_numbers<[1], [0], [0], [1], [0, 0, 1, 1], [], []>} : vector<256x8xf32>, vector<8x256xf32>, vector<256x256xf32> -> vector<256x256xf32>
    %cst_10 = arith.constant dense<0xFF800000> : vector<256xf32>
    %11 = vector.multi_reduction <maximumf>, %10, %cst_10 [1] : vector<256x256xf32> to vector<256xf32>
    %12 = vector.shape_cast %11 : vector<256xf32> to vector<256x1xf32>
    %13 = vector.broadcast %12 : vector<256x1xf32> to vector<256x256xf32>
    %14 = arith.subf %10, %13 : vector<256x256xf32>
    %15 = math.exp %14 : vector<256x256xf32>
    %c0_11 = arith.constant 0 : index
    %c0_12 = arith.constant 0 : index
    %c0_13 = arith.constant 0 : index
    %16 = vector.load %arg4[%c0_11, %c0_12, %c0_13] : memref<1x5x256xf32, #tpu.memory_space<vmem>>, vector<1x5x256xf32>
    %17 = vector.shape_cast %16 : vector<1x5x256xf32> to vector<5x256xf32>
    %cst_14 = arith.constant dense<0.000000e+00> : vector<5x256xf32>
    %18 = tpu.matmul %17, %15, %cst_14 {dimension_numbers = #tpu.dot_dimension_numbers<[1], [1], [0], [0], [0, 0, 1, 0], [], []>} : vector<5x256xf32>, vector<256x256xf32>, vector<5x256xf32> -> vector<5x256xf32>
    %19 = vector.extract_strided_slice %18 {offsets = [4, 0], sizes = [1, 256], strides = [1, 1]} : vector<5x256xf32> to vector<1x256xf32>
    %20 = tpu.reciprocal %19 : vector<1x256xf32> -> vector<1x256xf32>
    %21 = vector.extract_strided_slice %18 {offsets = [0, 0], sizes = [4, 256], strides = [1, 1]} : vector<5x256xf32> to vector<4x256xf32>
    %22 = vector.broadcast %20 : vector<1x256xf32> to vector<4x256xf32>
    %23 = arith.mulf %21, %22 : vector<4x256xf32>
    %24 = vector.extract_strided_slice %17 {offsets = [0, 0], sizes = [4, 256], strides = [1, 1]} : vector<5x256xf32> to vector<4x256xf32>
    %c0_15 = arith.constant 0 : index
    %c0_16 = arith.constant 0 : index
    %25 = vector.load %arg5[%c0_15, %c0_16] : memref<4x4xf32, #tpu.memory_space<vmem>>, vector<4x4xf32>
    %cst_17 = arith.constant dense<0.000000e+00> : vector<4x256xf32>
    %26 = tpu.matmul %25, %23, %cst_17 {dimension_numbers = #tpu.dot_dimension_numbers<[1], [0], [0], [1], [0, 0, 1, 1], [], []>} : vector<4x4xf32>, vector<4x256xf32>, vector<4x256xf32> -> vector<4x256xf32>
    %27 = vector.broadcast %0 : vector<4x1xf32> to vector<4x256xf32>
    %28 = arith.addf %26, %27 : vector<4x256xf32>
    %29 = arith.addf %28, %24 : vector<4x256xf32>
    %cst_18 = arith.constant dense<0.000000e+00> : vector<256xf32>
    %30 = vector.multi_reduction <add>, %29, %cst_18 [0] : vector<4x256xf32> to vector<256xf32>
    %31 = vector.shape_cast %30 : vector<256xf32> to vector<1x256xf32>
    %cst_19 = arith.constant 4.000000e+00 : f32
    %32 = vector.broadcast %cst_19 : f32 to vector<1x256xf32>
    %33 = arith.divf %31, %32 : vector<1x256xf32>
    %34 = vector.broadcast %33 : vector<1x256xf32> to vector<4x256xf32>
    %35 = arith.subf %29, %34 : vector<4x256xf32>
    %36 = arith.mulf %35, %35 : vector<4x256xf32>
    %cst_20 = arith.constant dense<0.000000e+00> : vector<256xf32>
    %37 = vector.multi_reduction <add>, %36, %cst_20 [0] : vector<4x256xf32> to vector<256xf32>
    %38 = vector.shape_cast %37 : vector<256xf32> to vector<1x256xf32>
    %cst_21 = arith.constant 4.000000e+00 : f32
    %39 = vector.broadcast %cst_21 : f32 to vector<1x256xf32>
    %40 = arith.divf %38, %39 : vector<1x256xf32>
    %cst_22 = arith.constant 9.99999974E-6 : f32
    %41 = vector.broadcast %cst_22 : f32 to vector<1x256xf32>
    %42 = arith.addf %40, %41 : vector<1x256xf32>
    %43 = math.rsqrt %42 : vector<1x256xf32>
    %44 = vector.broadcast %43 : vector<1x256xf32> to vector<4x256xf32>
    %45 = arith.mulf %35, %44 : vector<4x256xf32>
    %46 = vector.broadcast %1 : vector<4x1xf32> to vector<4x256xf32>
    %47 = arith.mulf %45, %46 : vector<4x256xf32>
    %48 = vector.broadcast %2 : vector<4x1xf32> to vector<4x256xf32>
    %49 = arith.addf %47, %48 : vector<4x256xf32>
    %c0_23 = arith.constant 0 : index
    %c0_24 = arith.constant 0 : index
    %c0_25 = arith.constant 0 : index
    %50 = vector.load %arg7[%c0_23, %c0_24, %c0_25] : memref<1x4x256xf32, #tpu.memory_space<vmem>>, vector<1x4x256xf32>
    %51 = vector.shape_cast %50 : vector<1x4x256xf32> to vector<4x256xf32>
    %52 = vector.shape_cast %49 : vector<4x256xf32> to vector<1x4x256xf32>
    tpu.vector_store %arg7[%c0_23, %c0_24, %c0_25], %52 {strides = array<i32>} : memref<1x4x256xf32, #tpu.memory_space<vmem>>, vector<1x4x256xf32>,
    return
  }
  func.func @transform_0(%arg0: i32, %arg1: i32) -> (i32, i32, i32) {
    %c0_i32 = arith.constant 0 : i32
    %c0_i32_0 = arith.constant 0 : i32
    %c0_i32_1 = arith.constant 0 : i32
    return %arg0, %c0_i32, %c0_i32_0 : i32, i32, i32
  }
  func.func @transform_1(%arg0: i32, %arg1: i32) -> (i32, i32, i32) {
    %c0_i32 = arith.constant 0 : i32
    %c0_i32_0 = arith.constant 0 : i32
    return %arg0, %c0_i32, %arg1 : i32, i32, i32
  }
  func.func @transform_2(%arg0: i32, %arg1: i32) -> (i32, i32, i32) {
    %c0_i32 = arith.constant 0 : i32
    %c0_i32_0 = arith.constant 0 : i32
    %c0_i32_1 = arith.constant 0 : i32
    return %arg0, %c0_i32, %c0_i32_0 : i32, i32, i32
  }
  func.func @transform_3(%arg0: i32, %arg1: i32) -> (i32, i32) {
    %c0_i32 = arith.constant 0 : i32
    %c0_i32_0 = arith.constant 0 : i32
    %c0_i32_1 = arith.constant 0 : i32
    return %c0_i32, %c0_i32_0 : i32, i32
  }
  func.func @transform_4(%arg0: i32, %arg1: i32) -> (i32, i32) {
    %c0_i32 = arith.constant 0 : i32
    %c0_i32_0 = arith.constant 0 : i32
    %c0_i32_1 = arith.constant 0 : i32
    return %c0_i32, %c0_i32_0 : i32, i32
  }
  func.func @transform_5(%arg0: i32, %arg1: i32) -> (i32, i32, i32) {
    %c0_i32 = arith.constant 0 : i32
    %c0_i32_0 = arith.constant 0 : i32
    return %arg0, %c0_i32, %arg1 : i32, i32, i32
  }
}

</mosaic_0001>

<llo_original>
// kernel: tpu_custom_call.1
$region0: #{tpu_custom_call.1}
  #allocation0 [shape = 'u32[]', space=smem, size = 0x4, offset = 0x4, fixed_abs, tag = 'smem constant byte address 0x4 - core index']
  #allocation1 [shape = 'u32[144,128]{1,0:T(1,128)}', space=vmem, size = 0x12000, scoped, tag = 'internal scratch']
  %s0 = inlined_call_operand.vmem [shape: f32[2,8,256], index: 0, kind: input, shape index: {}]
  %s1 = inlined_call_operand.hbm [shape: f32[2,8,256], index: 1, kind: input, shape index: {}]
  %s2 = inlined_call_operand.vmem [shape: f32[2,5,256], index: 2, kind: input, shape index: {}]
  %s3 = inlined_call_operand.vmem [shape: f32[4,4], index: 3, kind: input, shape index: {}]
  %s4 = inlined_call_operand.vmem [shape: f32[4,3], index: 4, kind: input, shape index: {}]
  %s5 = inlined_call_operand.hbm [shape: f32[2,4,256], index: 5, kind: output, shape index: {}]
  %s6 = sld [smem:[#allocation0]]
  $region57: #{tpu_custom_call.1} parent=0
    _
  %s8 = ssub.s32 1, %s6
  %s9 = scalar_select 0, %s8, %s6
  $region1: #{tpu_custom_call.1} parent=0
    #allocation2 [shape = 'u8[16384]{0}', space=vmem, size = 0x4000, scoped, tag = 'input window, operand 1']
    #allocation3 [shape = 's32[2]{0}', space=sflag, size = 0x8, scoped, tag = 'scoped memory for tpu_custom_call.1']
    #allocation4 [shape = 's32[2]{0}', space=sflag, size = 0x8, scoped, tag = 'scoped memory for tpu_custom_call.1']
    #allocation5 [shape = 'u8[8192]{0}', space=vmem, size = 0x2000, scoped, tag = 'output window, operand 0']
    %10 = vsyncpa [#allocation3], 0
    %s11 = scalar_lea.sflag [#allocation3], 1
    %12 = vsyncpa %s11, 0
    %13 = vsyncpa [#allocation4], 0
    %s14 = scalar_lea.sflag [#allocation4], 1
    %15 = vsyncpa %s14, 0
    loop: start=0, step=1, limit=4
    $region2: #{tpu_custom_call.1} parent=1 // loop_pre_header
      _
    $region3: #{tpu_custom_call.1} parent=1 // loop_header
      %s17 = sphi 0, %s21
      %p18 = scmp.ge.s32.totalorder %s17, 4
      %s24 = sphi 0, %s36
      %s25 = sphi 0, %s32
      %s26 = sphi 0, %s24
      %s27 = sphi 0, %s25
      %s28 = sphi 0, %s26
      %s29 = sphi 0, %s27
      %s39 = sphi 0, %s41
      %s42 = sphi 0, %s39
      %s43 = sphi 0, %s42
      %s59 = sphi 0, %s43
      %s67 = sphi 0, %s69
      %s70 = sphi 0, %s67
      %s71 = sphi 0, %s70
      %s87 = sphi 0, %s71
      %s93 = sphi 0, %s95
      %s96 = sphi 0, %s93
      %s97 = sphi 0, %s96
      %s113 = sphi 0, %s97
      %s117 = sphi 0, %s117
      %s119 = sphi 0, %s117
      %s120 = sphi 0, %s119
      %s134 = sphi 0, %s120
      %s138 = sphi 0, %s138
      %s140 = sphi 0, %s138
      %s141 = sphi 0, %s140
      %s155 = sphi 0, %s141
      %s163 = sphi 0, %s165
      %s166 = sphi 0, %s163
      %s167 = sphi 0, %s166
      %s183 = sphi 0, %s167
    $region4: #{tpu_custom_call.1} parent=1 // loop_header_branch
      %20 = sbr.rel (%p18) target = $region8
    $region5: #{tpu_custom_call.1} parent=1 // loop_body
      %s22 = ssub.s32 %s17, 1
      %s23 = ssub.s32 %s17, 2
      %s30 = sadd.s32 1, %s25
      %p31 = scmp.ge.s32.totalorder %s30, 1
      %s32 = scalar_select %p31, 0, %s30
      %s33 = sadd.s32 1, %s24
      %s34 = scalar_select %p31, %s33, %s24
      %p35 = scmp.ge.s32.totalorder %s34, 2
      %s36 = scalar_select %p35, 0, %s34
      %s37 = ssub.s32 %s24, %s36
      %p38 = scmp.eq.s32.totalorder %s37, 0
      %s40 = sadd.s32 %s39, 1
      %s41 = scalar_select %p38, %s39, %s40
      %p44 = pneg %p38
      %p45 = scmp.eq.s32.totalorder %s17, 1
      %p46 = por %p44, %p45
      %p47 = scmp.ne.s32.totalorder %s39, %s42
      %p48 = scmp.eq.s32.totalorder %s17, 0
      %p49 = por %p47, %p48
      %p50 = scmp.ne.s32.totalorder %s39, %s42
      %p51 = scmp.eq.s32.totalorder %s22, 1
      %p52 = por %p50, %p51
      %p53 = scmp.ne.s32.totalorder %s42, %s43
      %p54 = scmp.eq.s32.totalorder %s22, 0
      %p55 = por %p53, %p54
      %p56 = scmp.ne.s32.totalorder %s42, %s43
      %p57 = scmp.eq.s32.totalorder %s23, 1
      %p58 = por %p56, %p57
      %p60 = scmp.ne.s32.totalorder %s43, %s59
      %p61 = scmp.eq.s32.totalorder %s23, 0
      %p62 = por %p60, %p61
      %s63 = ssub.s32 %s24, %s36
      %s64 = ssub.s32 %s25, %s32
      %s65 = sor.u32 %s63, %s64
      %p66 = scmp.eq.s32.totalorder %s65, 0
      %s68 = sadd.s32 %s67, 1
      %s69 = scalar_select %p66, %s67, %s68
      %p72 = pneg %p66
      %p73 = scmp.eq.s32.totalorder %s17, 1
      %p74 = por %p72, %p73
      %p75 = scmp.ne.s32.totalorder %s67, %s70
      %p76 = scmp.eq.s32.totalorder %s17, 0
      %p77 = por %p75, %p76
      %p78 = scmp.ne.s32.totalorder %s67, %s70
      %p79 = scmp.eq.s32.totalorder %s22, 1
      %p80 = por %p78, %p79
      %p81 = scmp.ne.s32.totalorder %s70, %s71
      %p82 = scmp.eq.s32.totalorder %s22, 0
      %p83 = por %p81, %p82
      %p84 = scmp.ne.s32.totalorder %s70, %s71
      %p85 = scmp.eq.s32.totalorder %s23, 1
      %p86 = por %p84, %p85
      %p88 = scmp.ne.s32.totalorder %s71, %s87
      %p89 = scmp.eq.s32.totalorder %s23, 0
      %p90 = por %p88, %p89
      %s91 = ssub.s32 %s24, %s36
      %p92 = scmp.eq.s32.totalorder %s91, 0
      %s94 = sadd.s32 %s93, 1
      %s95 = scalar_select %p92, %s93, %s94
      %p98 = pneg %p92
      %p99 = scmp.eq.s32.totalorder %s17, 1
      %p100 = por %p98, %p99
      %p101 = scmp.ne.s32.totalorder %s93, %s96
      %p102 = scmp.eq.s32.totalorder %s17, 0
      %p103 = por %p101, %p102
      %p104 = scmp.ne.s32.totalorder %s93, %s96
      %p105 = scmp.eq.s32.totalorder %s22, 1
      %p106 = por %p104, %p105
      %p107 = scmp.ne.s32.totalorder %s96, %s97
      %p108 = scmp.eq.s32.totalorder %s22, 0
      %p109 = por %p107, %p108
      %p110 = scmp.ne.s32.totalorder %s96, %s97
      %p111 = scmp.eq.s32.totalorder %s23, 1
      %p112 = por %p110, %p111
      %p114 = scmp.ne.s32.totalorder %s97, %s113
      %p115 = scmp.eq.s32.totalorder %s23, 0
      %p116 = por %p114, %p115
      %s118 = sadd.s32 %s117, 1
      %p121 = scmp.eq.s32.totalorder %s17, 1
      %p122 = scmp.ne.s32.totalorder %s117, %s119
      %p123 = scmp.eq.s32.totalorder %s17, 0
      %p124 = por %p122, %p123
      %p125 = scmp.ne.s32.totalorder %s117, %s119
      %p126 = scmp.eq.s32.totalorder %s22, 1
      %p127 = por %p125, %p126
      %p128 = scmp.ne.s32.totalorder %s119, %s120
      %p129 = scmp.eq.s32.totalorder %s22, 0
      %p130 = por %p128, %p129
      %p131 = scmp.ne.s32.totalorder %s119, %s120
      %p132 = scmp.eq.s32.totalorder %s23, 1
      %p133 = por %p131, %p132
      %p135 = scmp.ne.s32.totalorder %s120, %s134
      %p136 = scmp.eq.s32.totalorder %s23, 0
      %p137 = por %p135, %p136
      %s139 = sadd.s32 %s138, 1
      %p142 = scmp.eq.s32.totalorder %s17, 1
      %p143 = scmp.ne.s32.totalorder %s138, %s140
      %p144 = scmp.eq.s32.totalorder %s17, 0
      %p145 = por %p143, %p144
      %p146 = scmp.ne.s32.totalorder %s138, %s140
      %p147 = scmp.eq.s32.totalorder %s22, 1
      %p148 = por %p146, %p147
      %p149 = scmp.ne.s32.totalorder %s140, %s141
      %p150 = scmp.eq.s32.totalorder %s22, 0
      %p151 = por %p149, %p150
      %p152 = scmp.ne.s32.totalorder %s140, %s141
      %p153 = scmp.eq.s32.totalorder %s23, 1
      %p154 = por %p152, %p153
      %p156 = scmp.ne.s32.totalorder %s141, %s155
      %p157 = scmp.eq.s32.totalorder %s23, 0
      %p158 = por %p156, %p157
      %s159 = ssub.s32 %s24, %s36
      %s160 = ssub.s32 %s25, %s32
      %s161 = sor.u32 %s159, %s160
      %p162 = scmp.eq.s32.totalorder %s161, 0
      %s164 = sadd.s32 %s163, 1
      %s165 = scalar_select %p162, %s163, %s164
      %p168 = pneg %p162
      %p169 = scmp.eq.s32.totalorder %s17, 1
      %p170 = por %p168, %p169
      %p171 = scmp.ne.s32.totalorder %s163, %s166
      %p172 = scmp.eq.s32.totalorder %s17, 0
      %p173 = por %p171, %p172
      %p174 = scmp.ne.s32.totalorder %s163, %s166
      %p175 = scmp.eq.s32.totalorder %s22, 1
      %p176 = por %p174, %p175
      %p177 = scmp.ne.s32.totalorder %s166, %s167
      %p178 = scmp.eq.s32.totalorder %s22, 0
      %p179 = por %p177, %p178
      %p180 = scmp.ne.s32.totalorder %s166, %s167
      %p181 = scmp.eq.s32.totalorder %s23, 1
      %p182 = por %p180, %p181
      %p184 = scmp.ne.s32.totalorder %s167, %s183
      %p185 = scmp.eq.s32.totalorder %s23, 0
      %p186 = por %p184, %p185
      %p187 = scmp.le.s32.totalorder 1, %s17
      %p188 = scmp.lt.s32.totalorder %s17, 3
      %p189 = pnand %p187, %p188
      %p190 = pneg %p189
      // Predicated region
      $region9: #{tpu_custom_call.1} parent=5 // pred_check
        _
      $region10: #{tpu_custom_call.1} parent=5 // pred_check_branch
        %192 = sbr.rel (%p189) target = $region12
      $region11: #{tpu_custom_call.1} parent=5 // pred_region
        %s193 = ssub.s32 %s17, 1
        // Predicated region
        $region13: #{tpu_custom_call.1} parent=11 // pred_check
          %p194 = pneg %p130
        $region14: #{tpu_custom_call.1} parent=11 // pred_check_branch
          %196 = sbr.rel (%p194) target = $region16
        $region15: #{tpu_custom_call.1} parent=11 // pred_region
          _
        $region16: #{tpu_custom_call.1} parent=11 // pred_fallthru
          _
        // Predicated region
        $region17: #{tpu_custom_call.1} parent=11 // pred_check
          %p197 = pneg %p151
        $region18: #{tpu_custom_call.1} parent=11 // pred_check_branch
          %199 = sbr.rel (%p197) target = $region20
        $region19: #{tpu_custom_call.1} parent=11 // pred_region
          _
        $region20: #{tpu_custom_call.1} parent=11 // pred_fallthru
          _
      $region12: #{tpu_custom_call.1} parent=5 // pred_fallthru
        _
      %p200 = scmp.lt.s32.totalorder %s17, 2
      // Predicated region
      $region21: #{tpu_custom_call.1} parent=5 // pred_check
        %p201 = pneg %p200
      $region22: #{tpu_custom_call.1} parent=5 // pred_check_branch
        %203 = sbr.rel (%p201) target = $region24
      $region23: #{tpu_custom_call.1} parent=5 // pred_region
        // Predicated region
        $region25: #{tpu_custom_call.1} parent=23 // pred_check
          %p204 = pneg %p49
        $region26: #{tpu_custom_call.1} parent=23 // pred_check_branch
          %206 = sbr.rel (%p204) target = $region28
        $region27: #{tpu_custom_call.1} parent=23 // pred_region
          %p207 = scmp.lt.s32.totalorder %s24, 1
          %s208 = scalar_select %p207, %s24, 1
          %s209 = smul.addr %s208, 2
          %s210 = smul.addr %s209, 8
          %s211 = scalar_lea.vmem %s0, %s210
        $region28: #{tpu_custom_call.1} parent=23 // pred_fallthru
          _
        // Predicated region
        $region29: #{tpu_custom_call.1} parent=23 // pred_check
          %p212 = pneg %p77
        $region30: #{tpu_custom_call.1} parent=23 // pred_check_branch
          %214 = sbr.rel (%p212) target = $region32
        $region31: #{tpu_custom_call.1} parent=23 // pred_region
          %s215 = sand.u32 %s67, 1
          %s216 = scalar_lea.sflag [#allocation3], %s215
          %s217 = sand.u32 %s67, 1
          %s218 = smul.addr %s217, 16
          %s219 = scalar_lea.vmem [#allocation2], %s218
          %s220 = smul.u32 2, %s25
          %s222 = ssub.s32 256, 256
          %223 = vsyncadd %s216, %s222
          %s224 = smul.addr %s24, 2
          %s225 = sadd.s32 %s220, %s224
          %s226 = smul.addr %s225, 128
          %s227 = scalar_lea.hbm %s1, %s226
          %s229 = sshll.u32 %s219, 4
          %s230 = int_to_ptr.vmem [resolvable:$true] %s229
          %232 = dma.hbm_to_vmem [thread:$0]  %s227, 256, %s230, %s216
        $region32: #{tpu_custom_call.1} parent=23 // pred_fallthru
          _
        // Predicated region
        $region33: #{tpu_custom_call.1} parent=23 // pred_check
          %p233 = pneg %p103
        $region34: #{tpu_custom_call.1} parent=23 // pred_check_branch
          %235 = sbr.rel (%p233) target = $region36
        $region35: #{tpu_custom_call.1} parent=23 // pred_region
          %p236 = scmp.lt.s32.totalorder %s24, 1
          %s237 = scalar_select %p236, %s24, 1
          %s238 = smul.addr %s237, 2
          %s239 = smul.addr %s238, 8
          %s240 = scalar_lea.vmem %s2, %s239
        $region36: #{tpu_custom_call.1} parent=23 // pred_fallthru
          _
      $region24: #{tpu_custom_call.1} parent=5 // pred_fallthru
        _
      %p241 = scmp.le.s32.totalorder 1, %s17
      %p242 = scmp.lt.s32.totalorder %s17, 3
      %p243 = pnand %p241, %p242
      %p244 = pneg %p243
      // Predicated region
      $region37: #{tpu_custom_call.1} parent=5 // pred_check
        _
      $region38: #{tpu_custom_call.1} parent=5 // pred_check_branch
        %246 = sbr.rel (%p243) target = $region40
      $region39: #{tpu_custom_call.1} parent=5 // pred_region
        %s247 = ssub.s32 %s17, 1
        %s248 = sand.u32 %s70, 1
        %s249 = scalar_lea.sflag [#allocation3], %s248
        %s250 = sand.u32 %s70, 1
        %s251 = smul.addr %s250, 16
        %s252 = scalar_lea.vmem [#allocation2], %s251
        // Predicated region
        $region41: #{tpu_custom_call.1} parent=39 // pred_check
          %p253 = pneg %p83
        $region42: #{tpu_custom_call.1} parent=39 // pred_check_branch
          %255 = sbr.rel (%p253) target = $region44
        $region43: #{tpu_custom_call.1} parent=39 // pred_region
          %256 = dma.done %s249, 256
        $region44: #{tpu_custom_call.1} parent=39 // pred_fallthru
          _
        %p257 = scmp.lt.s32.totalorder %s26, 1
        %s258 = scalar_select %p257, %s26, 1
        %s259 = smul.addr %s258, 2
        %s260 = smul.addr %s259, 8
        %s261 = scalar_lea.vmem %s0, %s260
        %p262 = pneg %p55
        %p263 = pneg %p52
        %s264 = sand.u32 %s70, 1
        %s265 = scalar_lea.sflag [#allocation3], %s264
        %s266 = sand.u32 %s70, 1
        %s267 = smul.addr %s266, 16
        %s268 = scalar_lea.vmem [#allocation2], %s267
        %p269 = pneg %p83
        %p270 = pneg %p80
        %p271 = scmp.lt.s32.totalorder %s26, 1
        %s272 = scalar_select %p271, %s26, 1
        %s273 = smul.addr %s272, 2
        %s274 = smul.addr %s273, 8
        %s275 = scalar_lea.vmem %s2, %s274
        %p276 = pneg %p109
        %p277 = pneg %p106
        %p278 = pneg %p130
        %p279 = pneg %p127
        %p280 = pneg %p151
        %p281 = pneg %p148
        %p282 = pneg %p179
        %p283 = pneg %p176
        %s284 = sand.u32 %s166, 1
        %s285 = scalar_lea.sflag [#allocation4], %s284
        %s286 = sand.u32 %s166, 1
        %s287 = smul.addr %s286, 8
        %s288 = scalar_lea.vmem [#allocation5], %s287
        %p289 = scmp.lt.s32.totalorder %s26, 1
        %s290 = scalar_select %p289, %s26, 1
        %s291 = smul.addr %s290, 2
        %s292 = smul.addr %s291, 8
        %s293 = scalar_lea.vmem %s0, %s292
        %s294 = smul.u32 2, %s27
        %p295 = scmp.lt.s32.totalorder %s26, 1
        %s296 = scalar_select %p295, %s26, 1
        %s297 = smul.addr %s296, 2
        %s298 = smul.addr %s297, 8
        %s299 = scalar_lea.vmem %s2, %s298
        %s300 = smul.u32 2, %s27
        %v301 = vld [vmem:[%s4] sm:$0xf]
        %v302 = vld [vmem:[%s252] sm:$0xff]
        %v303 = vld [vmem:[%s252 + $0x8] sm:$0xff]
        %v304 = vmul.f32 %v302, 0.5
        %v305 = vmul.f32 %v303, 0.5
        %306 = vxpose.xlu0.b32.start [1/16] %v304, 128
        %307 = vxpose.xlu0.b32.cont [2/16] 0.0, 128
        %308 = vxpose.xlu0.b32.cont [3/16] 0.0, 128
        %309 = vxpose.xlu0.b32.cont [4/16] 0.0, 128
        %310 = vxpose.xlu0.b32.cont [5/16] 0.0, 128
        %311 = vxpose.xlu0.b32.cont [6/16] 0.0, 128
        %312 = vxpose.xlu0.b32.cont [7/16] 0.0, 128
        %313 = vxpose.xlu0.b32.cont [8/16] 0.0, 128
        %314 = vxpose.xlu0.b32.cont [9/16] 0.0, 128
        %315 = vxpose.xlu0.b32.cont [10/16] 0.0, 128
        %316 = vxpose.xlu0.b32.cont [11/16] 0.0, 128
        %317 = vxpose.xlu0.b32.cont [12/16] 0.0, 128
        %318 = vxpose.xlu0.b32.cont [13/16] 0.0, 128
        %319 = vxpose.xlu0.b32.cont [14/16] 0.0, 128
        %320 = vxpose.xlu0.b32.cont [15/16] 0.0, 128
        %321 = vxpose.xlu0.b32.end [16/16] 0.0, 128
        %v322 = vpop.trf.xlu0
        %v323 = vpop.trf.xlu0
        %v324 = vpop.trf.xlu0
        %v325 = vpop.trf.xlu0
        %v326 = vpop.trf.xlu0
        %v327 = vpop.trf.xlu0
        %v328 = vpop.trf.xlu0
        %v329 = vpop.trf.xlu0
        %v330 = vpop.trf.xlu0
        %v331 = vpop.trf.xlu0
        %v332 = vpop.trf.xlu0
        %v333 = vpop.trf.xlu0
        %v334 = vpop.trf.xlu0
        %v335 = vpop.trf.xlu0
        %v336 = vpop.trf.xlu0
        %v337 = vpop.trf.xlu0
        %338 = vxpose.xlu0.b32.start [1/16] %v305, 128
        %339 = vxpose.xlu0.b32.cont [2/16] 0.0, 128
        %340 = vxpose.xlu0.b32.cont [3/16] 0.0, 128
        %341 = vxpose.xlu0.b32.cont [4/16] 0.0, 128
        %342 = vxpose.xlu0.b32.cont [5/16] 0.0, 128
        %343 = vxpose.xlu0.b32.cont [6/16] 0.0, 128
        %344 = vxpose.xlu0.b32.cont [7/16] 0.0, 128
        %345 = vxpose.xlu0.b32.cont [8/16] 0.0, 128
        %346 = vxpose.xlu0.b32.cont [9/16] 0.0, 128
        %347 = vxpose.xlu0.b32.cont [10/16] 0.0, 128
        %348 = vxpose.xlu0.b32.cont [11/16] 0.0, 128
        %349 = vxpose.xlu0.b32.cont [12/16] 0.0, 128
        %350 = vxpose.xlu0.b32.cont [13/16] 0.0, 128
        %351 = vxpose.xlu0.b32.cont [14/16] 0.0, 128
        %352 = vxpose.xlu0.b32.cont [15/16] 0.0, 128
        %353 = vxpose.xlu0.b32.end [16/16] 0.0, 128
        %v354 = vpop.trf.xlu0
        %v355 = vpop.trf.xlu0
        %v356 = vpop.trf.xlu0
        %v357 = vpop.trf.xlu0
        %v358 = vpop.trf.xlu0
        %v359 = vpop.trf.xlu0
        %v360 = vpop.trf.xlu0
        %v361 = vpop.trf.xlu0
        %v362 = vpop.trf.xlu0
        %v363 = vpop.trf.xlu0
        %v364 = vpop.trf.xlu0
        %v365 = vpop.trf.xlu0
        %v366 = vpop.trf.xlu0
        %v367 = vpop.trf.xlu0
        %v368 = vpop.trf.xlu0
        %v369 = vpop.trf.xlu0
        %v370 = vld [vmem:[%s293] sm:$0xff]
        %v371 = vld [vmem:[%s293 + $0x8] sm:$0xff]
        %vm372 = vcmask 64512
        %v374 = vsel %vm372, %v322, 0
        %v377 = vsel %vm372, %v323, 0
        %v380 = vsel %vm372, %v324, 0
        %v383 = vsel %vm372, %v325, 0
        %v386 = vsel %vm372, %v326, 0
        %v389 = vsel %vm372, %v327, 0
        %v392 = vsel %vm372, %v328, 0
        %v395 = vsel %vm372, %v329, 0
        %v398 = vsel %vm372, %v330, 0
        %v401 = vsel %vm372, %v331, 0
        %v404 = vsel %vm372, %v332, 0
        %v407 = vsel %vm372, %v333, 0
        %v410 = vsel %vm372, %v334, 0
        %v413 = vsel %vm372, %v335, 0
        %v416 = vsel %vm372, %v336, 0
        %v419 = vsel %vm372, %v337, 0
        %v422 = vsel %vm372, %v354, 0
        %v425 = vsel %vm372, %v355, 0
        %v428 = vsel %vm372, %v356, 0
        %v431 = vsel %vm372, %v357, 0
        %v434 = vsel %vm372, %v358, 0
        %v437 = vsel %vm372, %v359, 0
        %v440 = vsel %vm372, %v360, 0
        %v443 = vsel %vm372, %v361, 0
        %v446 = vsel %vm372, %v362, 0
        %v449 = vsel %vm372, %v363, 0
        %v452 = vsel %vm372, %v364, 0
        %v455 = vsel %vm372, %v365, 0
        %v458 = vsel %vm372, %v366, 0
        %v461 = vsel %vm372, %v367, 0
        %v464 = vsel %vm372, %v368, 0
        %v467 = vsel %vm372, %v369, 0
        %469 = vmatprep.subr.mxu0 0.0
        %470 = vmatpush1.msra.mxu0 0.0
        %471 = vmatprep.subr.mxu0 0.0
        %472 = vmatpush1.msra.mxu0 0.0
        %473 = vmatprep.subr.mxu0 0.0
        %474 = vmatpush1.msra.mxu0 0.0
        %475 = vmatprep.subr.mxu0 0.0
        %476 = vmatpush1.msra.mxu0 0.0
        %477 = vmatprep.subr.mxu0 0.0
        %478 = vmatpush1.msra.mxu0 0.0
        %479 = vmatprep.subr.mxu0 0.0
        %480 = vmatpush1.msra.mxu0 0.0
        %481 = vmatprep.subr.mxu0 0.0
        %482 = vmatpush1.msra.mxu0 0.0
        %483 = vmatprep.subr.mxu0 0.0
        %484 = vmatpush1.msra.mxu0 0.0
        %485 = vmatprep.subr.mxu0 0.0
        %486 = vmatpush1.msra.mxu0 0.0
        %487 = vmatprep.subr.mxu0 0.0
        %488 = vmatpush1.msra.mxu0 0.0
        %489 = vmatprep.subr.mxu0 0.0
        %490 = vmatpush1.msra.mxu0 0.0
        %491 = vmatprep.subr.mxu0 0.0
        %492 = vmatpush1.msra.mxu0 0.0
        %493 = vmatprep.subr.mxu0 0.0
        %494 = vmatpush1.msra.mxu0 0.0
        %495 = vmatprep.subr.mxu0 0.0
        %496 = vmatpush1.msra.mxu0 0.0
        %497 = vmatprep.subr.mxu0 0.0
        %498 = vmatpush1.msra.mxu0 0.0
        %499 = vmatprep.subr.mxu0 %v371
        %500 = vmatpush1.msra.mxu0 %v370
        %501 = vmatprep.subr.mxu0 0.0
        %502 = vmatpush2.msra.mxu0 0.0
        %503 = vmatprep.subr.mxu0 0.0
        %504 = vmatpush2.msra.mxu0 0.0
        %505 = vmatprep.subr.mxu0 0.0
        %506 = vmatpush2.msra.mxu0 0.0
        %507 = vmatprep.subr.mxu0 0.0
        %508 = vmatpush2.msra.mxu0 0.0
        %509 = vmatprep.subr.mxu0 0.0
        %510 = vmatpush2.msra.mxu0 0.0
        %511 = vmatprep.subr.mxu0 0.0
        %512 = vmatpush2.msra.mxu0 0.0
        %513 = vmatprep.subr.mxu0 0.0
        %514 = vmatpush2.msra.mxu0 0.0
        %515 = vmatprep.subr.mxu0 0.0
        %516 = vmatpush2.msra.mxu0 0.0
        %517 = vmatprep.subr.mxu0 0.0
        %518 = vmatpush2.msra.mxu0 0.0
        %519 = vmatprep.subr.mxu0 0.0
        %520 = vmatpush2.msra.mxu0 0.0
        %521 = vmatprep.subr.mxu0 0.0
        %522 = vmatpush2.msra.mxu0 0.0
        %523 = vmatprep.subr.mxu0 0.0
        %524 = vmatpush2.msra.mxu0 0.0
        %525 = vmatprep.subr.mxu0 0.0
        %526 = vmatpush2.msra.mxu0 0.0
        %527 = vmatprep.subr.mxu0 0.0
        %528 = vmatpush2.msra.mxu0 0.0
        %529 = vmatprep.subr.mxu0 0.0
        %530 = vmatpush2.msra.mxu0 0.0
        %531 = vmatprep.subr.mxu0 0.0
        %532 = vmatpush2.msra.mxu0 0.0
        %533 = vmatprep.mubr.f32.mxu0 0.0
        %534 = vmatmul.mubr.f32.gmra.mxu0 %v374
        %v535 = vpop.f32.mrf.mxu0
        %v536 = vadd.f32 0.0, %v535
        %v537 = vpop.f32.mrf.mxu0
        %v538 = vadd.f32 0.0, %v537
        %539 = vmatprep.mubr.f32.mxu0 0.0
        %540 = vmatmul.mubr.f32.gmra.mxu0 %v377
        %v541 = vpop.f32.mrf.mxu0
        %v542 = vadd.f32 0.0, %v541
        %v543 = vpop.f32.mrf.mxu0
        %v544 = vadd.f32 0.0, %v543
        %545 = vmatprep.mubr.f32.mxu0 0.0
        %546 = vmatmul.mubr.f32.gmra.mxu0 %v380
        %v547 = vpop.f32.mrf.mxu0
        %v548 = vadd.f32 0.0, %v547
        %v549 = vpop.f32.mrf.mxu0
        %v550 = vadd.f32 0.0, %v549
        %551 = vmatprep.mubr.f32.mxu0 0.0
        %552 = vmatmul.mubr.f32.gmra.mxu0 %v383
        %v553 = vpop.f32.mrf.mxu0
        %v554 = vadd.f32 0.0, %v553
        %v555 = vpop.f32.mrf.mxu0
        %v556 = vadd.f32 0.0, %v555
        %557 = vmatprep.mubr.f32.mxu0 0.0
        %558 = vmatmul.mubr.f32.gmra.mxu0 %v386
        %v559 = vpop.f32.mrf.mxu0
        %v560 = vadd.f32 0.0, %v559
        %v561 = vpop.f32.mrf.mxu0
        %v562 = vadd.f32 0.0, %v561
        %563 = vmatprep.mubr.f32.mxu0 0.0
        %564 = vmatmul.mubr.f32.gmra.mxu0 %v389
        %v565 = vpop.f32.mrf.mxu0
        %v566 = vadd.f32 0.0, %v565
        %v567 = vpop.f32.mrf.mxu0
        %v568 = vadd.f32 0.0, %v567
        %569 = vmatprep.mubr.f32.mxu0 0.0
        %570 = vmatmul.mubr.f32.gmra.mxu0 %v392
        %v571 = vpop.f32.mrf.mxu0
        %v572 = vadd.f32 0.0, %v571
        %v573 = vpop.f32.mrf.mxu0
        %v574 = vadd.f32 0.0, %v573
        %575 = vmatprep.mubr.f32.mxu0 0.0
        %576 = vmatmul.mubr.f32.gmra.mxu0 %v395
        %v577 = vpop.f32.mrf.mxu0
        %v578 = vadd.f32 0.0, %v577
        %v579 = vpop.f32.mrf.mxu0
        %v580 = vadd.f32 0.0, %v579
        %581 = vmatprep.mubr.f32.mxu0 0.0
        %582 = vmatmul.mubr.f32.gmra.mxu0 %v398
        %v583 = vpop.f32.mrf.mxu0
        %v584 = vadd.f32 0.0, %v583
        %v585 = vpop.f32.mrf.mxu0
        %v586 = vadd.f32 0.0, %v585
        %587 = vmatprep.mubr.f32.mxu0 0.0
        %588 = vmatmul.mubr.f32.gmra.mxu0 %v401
        %v589 = vpop.f32.mrf.mxu0
        %v590 = vadd.f32 0.0, %v589
        %v591 = vpop.f32.mrf.mxu0
        %v592 = vadd.f32 0.0, %v591
        %593 = vmatprep.mubr.f32.mxu0 0.0
        %594 = vmatmul.mubr.f32.gmra.mxu0 %v404
        %v595 = vpop.f32.mrf.mxu0
        %v596 = vadd.f32 0.0, %v595
        %v597 = vpop.f32.mrf.mxu0
        %v598 = vadd.f32 0.0, %v597
        %599 = vmatprep.mubr.f32.mxu0 0.0
        %600 = vmatmul.mubr.f32.gmra.mxu0 %v407
        %v601 = vpop.f32.mrf.mxu0
        %v602 = vadd.f32 0.0, %v601
        %v603 = vpop.f32.mrf.mxu0
        %v604 = vadd.f32 0.0, %v603
        %605 = vmatprep.mubr.f32.mxu0 0.0
        %606 = vmatmul.mubr.f32.gmra.mxu0 %v410
        %v607 = vpop.f32.mrf.mxu0
        %v608 = vadd.f32 0.0, %v607
        %v609 = vpop.f32.mrf.mxu0
        %v610 = vadd.f32 0.0, %v609
        %611 = vmatprep.mubr.f32.mxu0 0.0
        %612 = vmatmul.mubr.f32.gmra.mxu0 %v413
        %v613 = vpop.f32.mrf.mxu0
        %v614 = vadd.f32 0.0, %v613
        %v615 = vpop.f32.mrf.mxu0
        %v616 = vadd.f32 0.0, %v615
        %617 = vmatprep.mubr.f32.mxu0 0.0
        %618 = vmatmul.mubr.f32.gmra.mxu0 %v416
        %v619 = vpop.f32.mrf.mxu0
        %v620 = vadd.f32 0.0, %v619
        %v621 = vpop.f32.mrf.mxu0
        %v622 = vadd.f32 0.0, %v621
        %623 = vmatprep.mubr.f32.mxu0 0.0
        %624 = vmatmul.mubr.f32.gmra.mxu0 %v419
        %v625 = vpop.f32.mrf.mxu0
        %v626 = vadd.f32 0.0, %v625
        %v627 = vpop.f32.mrf.mxu0
        %v628 = vadd.f32 0.0, %v627
        %629 = vmatprep.mubr.f32.mxu0 0.0
        %630 = vmatmul.mubr.f32.gmra.mxu0 %v422
        %v631 = vpop.f32.mrf.mxu0
        %v632 = vadd.f32 0.0, %v631
        %v633 = vpop.f32.mrf.mxu0
        %v634 = vadd.f32 0.0, %v633
        %635 = vmatprep.mubr.f32.mxu0 0.0
        %636 = vmatmul.mubr.f32.gmra.mxu0 %v425
        %v637 = vpop.f32.mrf.mxu0
        %v638 = vadd.f32 0.0, %v637
        %v639 = vpop.f32.mrf.mxu0
        %v640 = vadd.f32 0.0, %v639
        %641 = vmatprep.mubr.f32.mxu0 0.0
        %642 = vmatmul.mubr.f32.gmra.mxu0 %v428
        %v643 = vpop.f32.mrf.mxu0
        %v644 = vadd.f32 0.0, %v643
        %v645 = vpop.f32.mrf.mxu0
        %v646 = vadd.f32 0.0, %v645
        %647 = vmatprep.mubr.f32.mxu0 0.0
        %648 = vmatmul.mubr.f32.gmra.mxu0 %v431
        %v649 = vpop.f32.mrf.mxu0
        %v650 = vadd.f32 0.0, %v649
        %v651 = vpop.f32.mrf.mxu0
        %v652 = vadd.f32 0.0, %v651
        %653 = vmatprep.mubr.f32.mxu0 0.0
        %654 = vmatmul.mubr.f32.gmra.mxu0 %v434
        %v655 = vpop.f32.mrf.mxu0
        %v656 = vadd.f32 0.0, %v655
        %v657 = vpop.f32.mrf.mxu0
        %v658 = vadd.f32 0.0, %v657
        %659 = vmatprep.mubr.f32.mxu0 0.0
        %660 = vmatmul.mubr.f32.gmra.mxu0 %v437
        %v661 = vpop.f32.mrf.mxu0
        %v662 = vadd.f32 0.0, %v661
        %v663 = vpop.f32.mrf.mxu0
        %v664 = vadd.f32 0.0, %v663
        %665 = vmatprep.mubr.f32.mxu0 0.0
        %666 = vmatmul.mubr.f32.gmra.mxu0 %v440
        %v667 = vpop.f32.mrf.mxu0
        %v668 = vadd.f32 0.0, %v667
        %v669 = vpop.f32.mrf.mxu0
        %v670 = vadd.f32 0.0, %v669
        %671 = vmatprep.mubr.f32.mxu0 0.0
        %672 = vmatmul.mubr.f32.gmra.mxu0 %v443
        %v673 = vpop.f32.mrf.mxu0
        %v674 = vadd.f32 0.0, %v673
        %v675 = vpop.f32.mrf.mxu0
        %v676 = vadd.f32 0.0, %v675
        %677 = vmatprep.mubr.f32.mxu0 0.0
        %678 = vmatmul.mubr.f32.gmra.mxu0 %v446
        %v679 = vpop.f32.mrf.mxu0
        %v680 = vadd.f32 0.0, %v679
        %v681 = vpop.f32.mrf.mxu0
        %v682 = vadd.f32 0.0, %v681
        %683 = vmatprep.mubr.f32.mxu0 0.0
        %684 = vmatmul.mubr.f32.gmra.mxu0 %v449
        %v685 = vpop.f32.mrf.mxu0
        %v686 = vadd.f32 0.0, %v685
        %v687 = vpop.f32.mrf.mxu0
        %v688 = vadd.f32 0.0, %v687
        %689 = vmatprep.mubr.f32.mxu0 0.0
        %690 = vmatmul.mubr.f32.gmra.mxu0 %v452
        %v691 = vpop.f32.mrf.mxu0
        %v692 = vadd.f32 0.0, %v691
        %v693 = vpop.f32.mrf.mxu0
        %v694 = vadd.f32 0.0, %v693
        %695 = vmatprep.mubr.f32.mxu0 0.0
        %696 = vmatmul.mubr.f32.gmra.mxu0 %v455
        %v697 = vpop.f32.mrf.mxu0
        %v698 = vadd.f32 0.0, %v697
        %v699 = vpop.f32.mrf.mxu0
        %v700 = vadd.f32 0.0, %v699
        %701 = vmatprep.mubr.f32.mxu0 0.0
        %702 = vmatmul.mubr.f32.gmra.mxu0 %v458
        %v703 = vpop.f32.mrf.mxu0
        %v704 = vadd.f32 0.0, %v703
        %v705 = vpop.f32.mrf.mxu0
        %v706 = vadd.f32 0.0, %v705
        %707 = vmatprep.mubr.f32.mxu0 0.0
        %708 = vmatmul.mubr.f32.gmra.mxu0 %v461
        %v709 = vpop.f32.mrf.mxu0
        %v710 = vadd.f32 0.0, %v709
        %v711 = vpop.f32.mrf.mxu0
        %v712 = vadd.f32 0.0, %v711
        %713 = vmatprep.mubr.f32.mxu0 0.0
        %714 = vmatmul.mubr.f32.gmra.mxu0 %v464
        %v715 = vpop.f32.mrf.mxu0
        %v716 = vadd.f32 0.0, %v715
        %v717 = vpop.f32.mrf.mxu0
        %v718 = vadd.f32 0.0, %v717
        %719 = vmatprep.mubr.f32.mxu0 0.0
        %720 = vmatmul.mubr.f32.gmra.mxu0 %v467
        %v721 = vpop.f32.mrf.mxu0
        %v722 = vadd.f32 0.0, %v721
        %v723 = vpop.f32.mrf.mxu0
        %v724 = vadd.f32 0.0, %v723
        %725 = vdwg.mxu0
        %v726 = vmax.f32 %v536, %v538
        %727 = vmax.xlane.f32.xlu0 %v726
        %v728 = vpop.xlane.xlu0 %727
        %v729 = vmax.f32 %v542, %v544
        %730 = vmax.xlane.f32.xlu0 %v729
        %v731 = vpop.xlane.xlu0 %730
        %v732 = vmax.f32 %v548, %v550
        %733 = vmax.xlane.f32.xlu0 %v732
        %v734 = vpop.xlane.xlu0 %733
        %v735 = vmax.f32 %v554, %v556
        %736 = vmax.xlane.f32.xlu0 %v735
        %v737 = vpop.xlane.xlu0 %736
        %v738 = vmax.f32 %v560, %v562
        %739 = vmax.xlane.f32.xlu0 %v738
        %v740 = vpop.xlane.xlu0 %739
        %v741 = vmax.f32 %v566, %v568
        %742 = vmax.xlane.f32.xlu0 %v741
        %v743 = vpop.xlane.xlu0 %742
        %v744 = vmax.f32 %v572, %v574
        %745 = vmax.xlane.f32.xlu0 %v744
        %v746 = vpop.xlane.xlu0 %745
        %v747 = vmax.f32 %v578, %v580
        %748 = vmax.xlane.f32.xlu0 %v747
        %v749 = vpop.xlane.xlu0 %748
        %v750 = vmax.f32 %v584, %v586
        %751 = vmax.xlane.f32.xlu0 %v750
        %v752 = vpop.xlane.xlu0 %751
        %v753 = vmax.f32 %v590, %v592
        %754 = vmax.xlane.f32.xlu0 %v753
        %v755 = vpop.xlane.xlu0 %754
        %v756 = vmax.f32 %v596, %v598
        %757 = vmax.xlane.f32.xlu0 %v756
        %v758 = vpop.xlane.xlu0 %757
        %v759 = vmax.f32 %v602, %v604
        %760 = vmax.xlane.f32.xlu0 %v759
        %v761 = vpop.xlane.xlu0 %760
        %v762 = vmax.f32 %v608, %v610
        %763 = vmax.xlane.f32.xlu0 %v762
        %v764 = vpop.xlane.xlu0 %763
        %v765 = vmax.f32 %v614, %v616
        %766 = vmax.xlane.f32.xlu0 %v765
        %v767 = vpop.xlane.xlu0 %766
        %v768 = vmax.f32 %v620, %v622
        %769 = vmax.xlane.f32.xlu0 %v768
        %v770 = vpop.xlane.xlu0 %769
        %v771 = vmax.f32 %v626, %v628
        %772 = vmax.xlane.f32.xlu0 %v771
        %v773 = vpop.xlane.xlu0 %772
        %v774 = vmax.f32 %v632, %v634
        %775 = vmax.xlane.f32.xlu0 %v774
        %v776 = vpop.xlane.xlu0 %775
        %v777 = vmax.f32 %v638, %v640
        %778 = vmax.xlane.f32.xlu0 %v777
        %v779 = vpop.xlane.xlu0 %778
        %v780 = vmax.f32 %v644, %v646
        %781 = vmax.xlane.f32.xlu0 %v780
        %v782 = vpop.xlane.xlu0 %781
        %v783 = vmax.f32 %v650, %v652
        %784 = vmax.xlane.f32.xlu0 %v783
        %v785 = vpop.xlane.xlu0 %784
        %v786 = vmax.f32 %v656, %v658
        %787 = vmax.xlane.f32.xlu0 %v786
        %v788 = vpop.xlane.xlu0 %787
        %v789 = vmax.f32 %v662, %v664
        %790 = vmax.xlane.f32.xlu0 %v789
        %v791 = vpop.xlane.xlu0 %790
        %v792 = vmax.f32 %v668, %v670
        %793 = vmax.xlane.f32.xlu0 %v792
        %v794 = vpop.xlane.xlu0 %793
        %v795 = vmax.f32 %v674, %v676
        %796 = vmax.xlane.f32.xlu0 %v795
        %v797 = vpop.xlane.xlu0 %796
        %v798 = vmax.f32 %v680, %v682
        %799 = vmax.xlane.f32.xlu0 %v798
        %v800 = vpop.xlane.xlu0 %799
        %v801 = vmax.f32 %v686, %v688
        %802 = vmax.xlane.f32.xlu0 %v801
        %v803 = vpop.xlane.xlu0 %802
        %v804 = vmax.f32 %v692, %v694
        %805 = vmax.xlane.f32.xlu0 %v804
        %v806 = vpop.xlane.xlu0 %805
        %v807 = vmax.f32 %v698, %v700
        %808 = vmax.xlane.f32.xlu0 %v807
        %v809 = vpop.xlane.xlu0 %808
        %v810 = vmax.f32 %v704, %v706
        %811 = vmax.xlane.f32.xlu0 %v810
        %v812 = vpop.xlane.xlu0 %811
        %v813 = vmax.f32 %v710, %v712
        %814 = vmax.xlane.f32.xlu0 %v813
        %v815 = vpop.xlane.xlu0 %814
        %v816 = vmax.f32 %v716, %v718
        %817 = vmax.xlane.f32.xlu0 %v816
        %v818 = vpop.xlane.xlu0 %817
        %v819 = vmax.f32 %v722, %v724
        %820 = vmax.xlane.f32.xlu0 %v819
        %v821 = vpop.xlane.xlu0 %820
        %v822 = vsub.f32 %v536, %v728
        %v823 = vsub.f32 %v538, %v728
        %v824 = vsub.f32 %v542, %v731
        %v825 = vsub.f32 %v544, %v731
        %v826 = vsub.f32 %v548, %v734
        %v827 = vsub.f32 %v550, %v734
        %v828 = vsub.f32 %v554, %v737
        %v829 = vsub.f32 %v556, %v737
        %v830 = vsub.f32 %v560, %v740
        %v831 = vsub.f32 %v562, %v740
        %v832 = vsub.f32 %v566, %v743
        %v833 = vsub.f32 %v568, %v743
        %v834 = vsub.f32 %v572, %v746
        %v835 = vsub.f32 %v574, %v746
        %v836 = vsub.f32 %v578, %v749
        %v837 = vsub.f32 %v580, %v749
        %v838 = vsub.f32 %v584, %v752
        %v839 = vsub.f32 %v586, %v752
        %v840 = vsub.f32 %v590, %v755
        %v841 = vsub.f32 %v592, %v755
        %v842 = vsub.f32 %v596, %v758
        %v843 = vsub.f32 %v598, %v758
        %v844 = vsub.f32 %v602, %v761
        %v845 = vsub.f32 %v604, %v761
        %v846 = vsub.f32 %v608, %v764
        %v847 = vsub.f32 %v610, %v764
        %v848 = vsub.f32 %v614, %v767
        %v849 = vsub.f32 %v616, %v767
        %v850 = vsub.f32 %v620, %v770
        %v851 = vsub.f32 %v622, %v770
        %v852 = vsub.f32 %v626, %v773
        %v853 = vsub.f32 %v628, %v773
        %v854 = vsub.f32 %v632, %v776
        %v855 = vsub.f32 %v634, %v776
        %v856 = vsub.f32 %v638, %v779
        %v857 = vsub.f32 %v640, %v779
        %v858 = vsub.f32 %v644, %v782
        %v859 = vsub.f32 %v646, %v782
        %v860 = vsub.f32 %v650, %v785
        %v861 = vsub.f32 %v652, %v785
        %v862 = vsub.f32 %v656, %v788
        %v863 = vsub.f32 %v658, %v788
        %v864 = vsub.f32 %v662, %v791
        %v865 = vsub.f32 %v664, %v791
        %v866 = vsub.f32 %v668, %v794
        %v867 = vsub.f32 %v670, %v794
        %v868 = vsub.f32 %v674, %v797
        %v869 = vsub.f32 %v676, %v797
        %v870 = vsub.f32 %v680, %v800
        %v871 = vsub.f32 %v682, %v800
        %v872 = vsub.f32 %v686, %v803
        %v873 = vsub.f32 %v688, %v803
        %v874 = vsub.f32 %v692, %v806
        %v875 = vsub.f32 %v694, %v806
        %v876 = vsub.f32 %v698, %v809
        %v877 = vsub.f32 %v700, %v809
        %v878 = vsub.f32 %v704, %v812
        %v879 = vsub.f32 %v706, %v812
        %v880 = vsub.f32 %v710, %v815
        %v881 = vsub.f32 %v712, %v815
        %v882 = vsub.f32 %v716, %v818
        %v883 = vsub.f32 %v718, %v818
        %v884 = vsub.f32 %v722, %v821
        %v885 = vsub.f32 %v724, %v821
        %v886 = vmul.f32 %v822, 1.442695
        %v887 = vpow.pop %v886
        %v888 = vmul.f32 %v823, 1.442695
        %v889 = vpow.pop %v888
        %v890 = vmul.f32 %v824, 1.442695
        %v891 = vpow.pop %v890
        %v892 = vmul.f32 %v825, 1.442695
        %v893 = vpow.pop %v892
        %v894 = vmul.f32 %v826, 1.442695
        %v895 = vpow.pop %v894
        %v896 = vmul.f32 %v827, 1.442695
        %v897 = vpow.pop %v896
        %v898 = vmul.f32 %v828, 1.442695
        %v899 = vpow.pop %v898
        %v900 = vmul.f32 %v829, 1.442695
        %v901 = vpow.pop %v900
        %v902 = vmul.f32 %v830, 1.442695
        %v903 = vpow.pop %v902
        %v904 = vmul.f32 %v831, 1.442695
        %v905 = vpow.pop %v904
        %v906 = vmul.f32 %v832, 1.442695
        %v907 = vpow.pop %v906
        %v908 = vmul.f32 %v833, 1.442695
        %v909 = vpow.pop %v908
        %v910 = vmul.f32 %v834, 1.442695
        %v911 = vpow.pop %v910
        %v912 = vmul.f32 %v835, 1.442695
        %v913 = vpow.pop %v912
        %v914 = vmul.f32 %v836, 1.442695
        %v915 = vpow.pop %v914
        %v916 = vmul.f32 %v837, 1.442695
        %v917 = vpow.pop %v916
        %v918 = vmul.f32 %v838, 1.442695
        %v919 = vpow.pop %v918
        %v920 = vmul.f32 %v839, 1.442695
        %v921 = vpow.pop %v920
        %v922 = vmul.f32 %v840, 1.442695
        %v923 = vpow.pop %v922
        %v924 = vmul.f32 %v841, 1.442695
        %v925 = vpow.pop %v924
        %v926 = vmul.f32 %v842, 1.442695
        %v927 = vpow.pop %v926
        %v928 = vmul.f32 %v843, 1.442695
        %v929 = vpow.pop %v928
        %v930 = vmul.f32 %v844, 1.442695
        %v931 = vpow.pop %v930
        %v932 = vmul.f32 %v845, 1.442695
        %v933 = vpow.pop %v932
        %v934 = vmul.f32 %v846, 1.442695
        %v935 = vpow.pop %v934
        %v936 = vmul.f32 %v847, 1.442695
        %v937 = vpow.pop %v936
        %v938 = vmul.f32 %v848, 1.442695
        %v939 = vpow.pop %v938
        %v940 = vmul.f32 %v849, 1.442695
        %v941 = vpow.pop %v940
        %v942 = vmul.f32 %v850, 1.442695
        %v943 = vpow.pop %v942
        %v944 = vmul.f32 %v851, 1.442695
        %v945 = vpow.pop %v944
        %v946 = vmul.f32 %v852, 1.442695
        %v947 = vpow.pop %v946
        %v948 = vmul.f32 %v853, 1.442695
        %v949 = vpow.pop %v948
        %v950 = vmul.f32 %v854, 1.442695
        %v951 = vpow.pop %v950
        %v952 = vmul.f32 %v855, 1.442695
        %v953 = vpow.pop %v952
        %v954 = vmul.f32 %v856, 1.442695
        %v955 = vpow.pop %v954
        %v956 = vmul.f32 %v857, 1.442695
        %v957 = vpow.pop %v956
        %v958 = vmul.f32 %v858, 1.442695
        %v959 = vpow.pop %v958
        %v960 = vmul.f32 %v859, 1.442695
        %v961 = vpow.pop %v960
        %v962 = vmul.f32 %v860, 1.442695
        %v963 = vpow.pop %v962
        %v964 = vmul.f32 %v861, 1.442695
        %v965 = vpow.pop %v964
        %v966 = vmul.f32 %v862, 1.442695
        %v967 = vpow.pop %v966
        %v968 = vmul.f32 %v863, 1.442695
        %v969 = vpow.pop %v968
        %v970 = vmul.f32 %v864, 1.442695
        %v971 = vpow.pop %v970
        %v972 = vmul.f32 %v865, 1.442695
        %v973 = vpow.pop %v972
        %v974 = vmul.f32 %v866, 1.442695
        %v975 = vpow.pop %v974
        %v976 = vmul.f32 %v867, 1.442695
        %v977 = vpow.pop %v976
        %v978 = vmul.f32 %v868, 1.442695
        %v979 = vpow.pop %v978
        %v980 = vmul.f32 %v869, 1.442695
        %v981 = vpow.pop %v980
        %v982 = vmul.f32 %v870, 1.442695
        %v983 = vpow.pop %v982
        %v984 = vmul.f32 %v871, 1.442695
        %v985 = vpow.pop %v984
        %v986 = vmul.f32 %v872, 1.442695
        %v987 = vpow.pop %v986
        %v988 = vmul.f32 %v873, 1.442695
        %v989 = vpow.pop %v988
        %v990 = vmul.f32 %v874, 1.442695
        %v991 = vpow.pop %v990
        %v992 = vmul.f32 %v875, 1.442695
        %v993 = vpow.pop %v992
        %v994 = vmul.f32 %v876, 1.442695
        %v995 = vpow.pop %v994
        %v996 = vmul.f32 %v877, 1.442695
        %v997 = vpow.pop %v996
        %v998 = vmul.f32 %v878, 1.442695
        %v999 = vpow.pop %v998
        %v1000 = vmul.f32 %v879, 1.442695
        %v1001 = vpow.pop %v1000
        %v1002 = vmul.f32 %v880, 1.442695
        %v1003 = vpow.pop %v1002
        %v1004 = vmul.f32 %v881, 1.442695
        %v1005 = vpow.pop %v1004
        %v1006 = vmul.f32 %v882, 1.442695
        %v1007 = vpow.pop %v1006
        %v1008 = vmul.f32 %v883, 1.442695
        %v1009 = vpow.pop %v1008
        %v1010 = vmul.f32 %v884, 1.442695
        %v1011 = vpow.pop %v1010
        %v1012 = vmul.f32 %v885, 1.442695
        %v1013 = vpow.pop %v1012
        %v1014 = vld [vmem:[%s299] sm:$0x1f]
        %v1015 = vld [vmem:[%s299 + $0x8] sm:$0x1f]
        %1016 = vmatprep.subr.mxu0 %v949
        %1017 = vmatpush1.xpose.msra.mxu0 %v947
        %1018 = vmatprep.subr.mxu0 %v945
        %1019 = vmatpush1.xpose.msra.mxu0 %v943
        %1020 = vmatprep.subr.mxu0 %v941
        %1021 = vmatpush1.xpose.msra.mxu0 %v939
        %1022 = vmatprep.subr.mxu0 %v937
        %1023 = vmatpush1.xpose.msra.mxu0 %v935
        %1024 = vmatprep.subr.mxu0 %v933
        %1025 = vmatpush1.xpose.msra.mxu0 %v931
        %1026 = vmatprep.subr.mxu0 %v929
        %1027 = vmatpush1.xpose.msra.mxu0 %v927
        %1028 = vmatprep.subr.mxu0 %v925
        %1029 = vmatpush1.xpose.msra.mxu0 %v923
        %1030 = vmatprep.subr.mxu0 %v921
        %1031 = vmatpush1.xpose.msra.mxu0 %v919
        %1032 = vmatprep.subr.mxu0 %v917
        %1033 = vmatpush1.xpose.msra.mxu0 %v915
        %1034 = vmatprep.subr.mxu0 %v913
        %1035 = vmatpush1.xpose.msra.mxu0 %v911
        %1036 = vmatprep.subr.mxu0 %v909
        %1037 = vmatpush1.xpose.msra.mxu0 %v907
        %1038 = vmatprep.subr.mxu0 %v905
        %1039 = vmatpush1.xpose.msra.mxu0 %v903
        %1040 = vmatprep.subr.mxu0 %v901
        %1041 = vmatpush1.xpose.msra.mxu0 %v899
        %1042 = vmatprep.subr.mxu0 %v897
        %1043 = vmatpush1.xpose.msra.mxu0 %v895
        %1044 = vmatprep.subr.mxu0 %v893
        %1045 = vmatpush1.xpose.msra.mxu0 %v891
        %1046 = vmatprep.subr.mxu0 %v889
        %1047 = vmatpush1.xpose.msra.mxu0 %v887
        %1048 = vmatprep.subr.mxu0 %v1013
        %1049 = vmatpush2.xpose.msra.mxu0 %v1011
        %1050 = vmatprep.subr.mxu0 %v1009
        %1051 = vmatpush2.xpose.msra.mxu0 %v1007
        %1052 = vmatprep.subr.mxu0 %v1005
        %1053 = vmatpush2.xpose.msra.mxu0 %v1003
        %1054 = vmatprep.subr.mxu0 %v1001
        %1055 = vmatpush2.xpose.msra.mxu0 %v999
        %1056 = vmatprep.subr.mxu0 %v997
        %1057 = vmatpush2.xpose.msra.mxu0 %v995
        %1058 = vmatprep.subr.mxu0 %v993
        %1059 = vmatpush2.xpose.msra.mxu0 %v991
        %1060 = vmatprep.subr.mxu0 %v989
        %1061 = vmatpush2.xpose.msra.mxu0 %v987
        %1062 = vmatprep.subr.mxu0 %v985
        %1063 = vmatpush2.xpose.msra.mxu0 %v983
        %1064 = vmatprep.subr.mxu0 %v981
        %1065 = vmatpush2.xpose.msra.mxu0 %v979
        %1066 = vmatprep.subr.mxu0 %v977
        %1067 = vmatpush2.xpose.msra.mxu0 %v975
        %1068 = vmatprep.subr.mxu0 %v973
        %1069 = vmatpush2.xpose.msra.mxu0 %v971
        %1070 = vmatprep.subr.mxu0 %v969
        %1071 = vmatpush2.xpose.msra.mxu0 %v967
        %1072 = vmatprep.subr.mxu0 %v965
        %1073 = vmatpush2.xpose.msra.mxu0 %v963
        %1074 = vmatprep.subr.mxu0 %v961
        %1075 = vmatpush2.xpose.msra.mxu0 %v959
        %1076 = vmatprep.subr.mxu0 %v957
        %1077 = vmatpush2.xpose.msra.mxu0 %v955
        %1078 = vmatprep.subr.mxu0 %v953
        %1079 = vmatpush2.xpose.msra.mxu0 %v951
        %1080 = vmatprep.mubr.f32.mxu0 %v1015
        %1081 = vmatmul.mubr.f32.gmra.mxu0 %v1014
        %v1082 = vpop.f32.mrf.mxu0
        %v1083 = vadd.f32 0.0, %v1082
        %v1084 = vpop.f32.mrf.mxu0
        %v1085 = vadd.f32 0.0, %v1084
        %1086 = vdwg.mxu0
        %v1087 = vrcp.pop %v1083
        %v1088 = vrcp.pop %v1085
        %v1089 = vlaneseq
        %v1090 = vshrl.u32 %v1089, 7
        %v1091 = vsub.s32 4, %v1090
        %v1092 = vrot.slane %v1087, %v1091
        %v1093 = vlaneseq
        %v1094 = vshrl.u32 %v1093, 7
        %v1095 = vsub.s32 4, %v1094
        %v1096 = vrot.slane %v1088, %v1095
        %v1097 = vmul.f32 %v1083, %v1092
        %v1098 = vmul.f32 %v1085, %v1096
        %v1099 = vld [vmem:[%s3] sm:$0xf]
        %1101 = vset.pattern.permute.xlu0 0
        %1102 = vperm.xlu0 %1101, %v301
        %v1103 = vpop.permute.xlu0 %1102
        %vm1105 = vcmask 31744
        %v1107 = vsel %vm1105, %v1099, 0
        %vm1109 = vcmask 1043456
        %v1111 = vsel %vm1109, %v1097, 0
        %v1114 = vsel %vm1109, %v1098, 0
        %1116 = vmatprep.subr.mxu0 0.0
        %1117 = vmatpush1.msra.mxu0 0.0
        %1118 = vmatprep.subr.mxu0 0.0
        %1119 = vmatpush1.msra.mxu0 0.0
        %1120 = vmatprep.subr.mxu0 0.0
        %1121 = vmatpush1.msra.mxu0 0.0
        %1122 = vmatprep.subr.mxu0 0.0
        %1123 = vmatpush1.msra.mxu0 0.0
        %1124 = vmatprep.subr.mxu0 0.0
        %1125 = vmatpush1.msra.mxu0 0.0
        %1126 = vmatprep.subr.mxu0 0.0
        %1127 = vmatpush1.msra.mxu0 0.0
        %1128 = vmatprep.subr.mxu0 0.0
        %1129 = vmatpush1.msra.mxu0 0.0
        %1130 = vmatprep.subr.mxu0 0.0
        %1131 = vmatpush1.msra.mxu0 0.0
        %1132 = vmatprep.subr.mxu0 0.0
        %1133 = vmatpush1.msra.mxu0 0.0
        %1134 = vmatprep.subr.mxu0 0.0
        %1135 = vmatpush1.msra.mxu0 0.0
        %1136 = vmatprep.subr.mxu0 0.0
        %1137 = vmatpush1.msra.mxu0 0.0
        %1138 = vmatprep.subr.mxu0 0.0
        %1139 = vmatpush1.msra.mxu0 0.0
        %1140 = vmatprep.subr.mxu0 0.0
        %1141 = vmatpush1.msra.mxu0 0.0
        %1142 = vmatprep.subr.mxu0 0.0
        %1143 = vmatpush1.msra.mxu0 0.0
        %1144 = vmatprep.subr.mxu0 0.0
        %1145 = vmatpush1.msra.mxu0 0.0
        %1146 = vmatprep.subr.mxu0 %v1114
        %1147 = vmatpush1.msra.mxu0 %v1111
        %1148 = vmatprep.subr.mxu0 0.0
        %1149 = vmatpush2.msra.mxu0 0.0
        %1150 = vmatprep.subr.mxu0 0.0
        %1151 = vmatpush2.msra.mxu0 0.0
        %1152 = vmatprep.subr.mxu0 0.0
        %1153 = vmatpush2.msra.mxu0 0.0
        %1154 = vmatprep.subr.mxu0 0.0
        %1155 = vmatpush2.msra.mxu0 0.0
        %1156 = vmatprep.subr.mxu0 0.0
        %1157 = vmatpush2.msra.mxu0 0.0
        %1158 = vmatprep.subr.mxu0 0.0
        %1159 = vmatpush2.msra.mxu0 0.0
        %1160 = vmatprep.subr.mxu0 0.0
        %1161 = vmatpush2.msra.mxu0 0.0
        %1162 = vmatprep.subr.mxu0 0.0
        %1163 = vmatpush2.msra.mxu0 0.0
        %1164 = vmatprep.subr.mxu0 0.0
        %1165 = vmatpush2.msra.mxu0 0.0
        %1166 = vmatprep.subr.mxu0 0.0
        %1167 = vmatpush2.msra.mxu0 0.0
        %1168 = vmatprep.subr.mxu0 0.0
        %1169 = vmatpush2.msra.mxu0 0.0
        %1170 = vmatprep.subr.mxu0 0.0
        %1171 = vmatpush2.msra.mxu0 0.0
        %1172 = vmatprep.subr.mxu0 0.0
        %1173 = vmatpush2.msra.mxu0 0.0
        %1174 = vmatprep.subr.mxu0 0.0
        %1175 = vmatpush2.msra.mxu0 0.0
        %1176 = vmatprep.subr.mxu0 0.0
        %1177 = vmatpush2.msra.mxu0 0.0
        %1178 = vmatprep.subr.mxu0 0.0
        %1179 = vmatpush2.msra.mxu0 0.0
        %1180 = vmatprep.mubr.f32.mxu0 0.0
        %1181 = vmatmul.mubr.f32.gmra.mxu0 %v1107
        %v1182 = vpop.f32.mrf.mxu0
        %v1183 = vadd.f32 %v1103, %v1182
        %v1184 = vpop.f32.mrf.mxu0
        %v1185 = vadd.f32 %v1103, %v1184
        %1186 = vdwg.mxu0
        %v1187 = vadd.f32 %v1183, %v1014
        %v1188 = vadd.f32 %v1185, %v1015
        %v1189 = vsel %vm1109, %v1187, 0.0
        %v1190 = vrot.slane %v1189, 4
        %v1191 = vadd.f32 %v1189, %v1190
        %v1192 = vrot.slane %v1191, 2
        %v1193 = vadd.f32 %v1191, %v1192
        %v1194 = vrot.slane %v1193, 1
        %v1195 = vadd.f32 %v1193, %v1194
        %v1196 = vsel %vm1109, %v1188, 0.0
        %v1197 = vrot.slane %v1196, 4
        %v1198 = vadd.f32 %v1196, %v1197
        %v1199 = vrot.slane %v1198, 2
        %v1200 = vadd.f32 %v1198, %v1199
        %v1201 = vrot.slane %v1200, 1
        %v1202 = vadd.f32 %v1200, %v1201
        %v1203 = vrcp.pop 4.0
        %v1204 = vmul.f32 %v1195, %v1203
        %v1205 = vmul.f32 %v1202, %v1203
        %v1206 = vsub.f32 %v1187, %v1204
        %v1207 = vsub.f32 %v1188, %v1205
        %v1208 = vmul.f32 %v1206, %v1206
        %v1209 = vmul.f32 %v1207, %v1207
        %v1210 = vsel %vm1109, %v1208, 0.0
        %v1211 = vrot.slane %v1210, 4
        %v1212 = vadd.f32 %v1210, %v1211
        %v1213 = vrot.slane %v1212, 2
        %v1214 = vadd.f32 %v1212, %v1213
        %v1215 = vrot.slane %v1214, 1
        %v1216 = vadd.f32 %v1214, %v1215
        %v1217 = vsel %vm1109, %v1209, 0.0
        %v1218 = vrot.slane %v1217, 4
        %v1219 = vadd.f32 %v1217, %v1218
        %v1220 = vrot.slane %v1219, 2
        %v1221 = vadd.f32 %v1219, %v1220
        %v1222 = vrot.slane %v1221, 1
        %v1223 = vadd.f32 %v1221, %v1222
        %v1224 = vmul.f32 %v1216, %v1203
        %v1225 = vmul.f32 %v1223, %v1203
        %v1226 = vadd.f32 %v1224, 1e-05
        %v1227 = vadd.f32 %v1225, 1e-05
        %v1228 = vrsqrt.pop %v1226
        %v1229 = vrsqrt.pop %v1227
        %v1230 = vmul.f32 %v1206, %v1228
        %v1231 = vmul.f32 %v1207, %v1229
        %1232 = vset.pattern.permute.xlu0 1
        %1233 = vperm.xlu0 %1232, %v301
        %v1234 = vpop.permute.xlu0 %1233
        %v1236 = vmul.f32 %v1230, %v1234
        %v1237 = vmul.f32 %v1231, %v1234
        %1238 = vset.pattern.permute.xlu0 2
        %1239 = vperm.xlu0 %1238, %v301
        %v1240 = vpop.permute.xlu0 %1239
        %v1242 = vadd.f32 %v1236, %v1240
        %v1243 = vadd.f32 %v1237, %v1240
        %v1246 = vcombine.low %v1242, %v1243
        %1248 = vst [vmem:[%s288] sm:$0xff] %v1246
        %s1249 = sand.u32 %s166, 1
        %s1250 = scalar_lea.sflag [#allocation4], %s1249
        %s1251 = sand.u32 %s166, 1
        %s1252 = smul.addr %s1251, 8
        %s1253 = scalar_lea.vmem [#allocation5], %s1252
        // Predicated region
        $region45: #{tpu_custom_call.1} parent=39 // pred_check
          %p1254 = pneg %p176
        $region46: #{tpu_custom_call.1} parent=39 // pred_check_branch
          %1256 = sbr.rel (%p1254) target = $region48
        $region47: #{tpu_custom_call.1} parent=39 // pred_region
          %s1257 = smul.u32 2, %s27
          %s1259 = ssub.s32 128, 128
          %1260 = vsyncadd %s1250, %s1259
          %s1261 = smul.addr %s26, 2
          %s1262 = sadd.s32 %s1257, %s1261
          %s1263 = smul.addr %s1262, 64
          %s1264 = scalar_lea.hbm %s5, %s1263
          %s1266 = sshll.u32 %s1253, 4
          %s1267 = int_to_ptr.vmem [resolvable:$true] %s1266
          %1269 = dma.vmem_to_hbm [thread:$0]  %s1267, 128, %s1264, %s1250
        $region48: #{tpu_custom_call.1} parent=39 // pred_fallthru
          _
      $region40: #{tpu_custom_call.1} parent=5 // pred_fallthru
        _
      %p1270 = scmp.le.s32.totalorder 2, %s17
      // Predicated region
      $region49: #{tpu_custom_call.1} parent=5 // pred_check
        %p1271 = pneg %p1270
      $region50: #{tpu_custom_call.1} parent=5 // pred_check_branch
        %1273 = sbr.rel (%p1271) target = $region52
      $region51: #{tpu_custom_call.1} parent=5 // pred_region
        %s1274 = ssub.s32 %s17, 2
        // Predicated region
        $region53: #{tpu_custom_call.1} parent=51 // pred_check
          %p1275 = pneg %p182
        $region54: #{tpu_custom_call.1} parent=51 // pred_check_branch
          %1277 = sbr.rel (%p1275) target = $region56
        $region55: #{tpu_custom_call.1} parent=51 // pred_region
          %s1278 = sand.u32 %s167, 1
          %s1279 = scalar_lea.sflag [#allocation4], %s1278
          %s1280 = sand.u32 %s167, 1
          %s1281 = smul.addr %s1280, 8
          %s1282 = scalar_lea.vmem [#allocation5], %s1281
          %1283 = dma.done %s1279, 128
        $region56: #{tpu_custom_call.1} parent=51 // pred_fallthru
          _
      $region52: #{tpu_custom_call.1} parent=5 // pred_fallthru
        _
    $region6: #{tpu_custom_call.1} parent=1 // loop_footer
      %s21 = sadd.s32 1, %s17
    $region7: #{tpu_custom_call.1} parent=1 // loop_footer_branch
      %16 = sbr.rel target = $region3
    $region8: #{tpu_custom_call.1} parent=1 // loop_exit
      _
    %1284 = vsyncpa [#allocation3], 1
    %s1285 = scalar_lea.sflag [#allocation3], 1
    %1286 = vsyncpa %s1285, 1
    %1287 = vsyncpa [#allocation4], 1
    %s1288 = scalar_lea.sflag [#allocation4], 1
    %1289 = vsyncpa %s1288, 1

</llo_original>
